<compile_context>
chip_gen: v5e
topology: v5e:2x2
jax: 0.10.0
libtpu: 0.0.40
codegen_flags: <defaults>
</compile_context>

<pallas_src>
import functools
import re

import jax
import jax.numpy as jnp
from jax.experimental import pallas as pl
from jax.experimental.pallas import tpu as pltpu

# ----- logical dims (from the PyTorch module) -----
D_IN, D1, D2, D3, D5, D_OUT = 3, 27, 243, 81, 81, 1
# ----- lane/sublane padded dims used by the kernel -----
P_IN, P1, P2, P3, P5 = 8, 128, 256, 128, 128

# Batch-tile cap: the kernel is heavily compute-bound (~166 kFLOP/row vs ~20 B/row of
# HBM traffic), so big tiles amortize the ~0.35 us per-grid-step overhead and the MXU
# weight re-push.  2048 rows keeps all intermediates far below even v7x's 64 MiB VMEM.
TILE_CAP = 2048
# In-kernel row sub-chunk: lets the LLO scheduler overlap one chunk's MXU matmuls
# with the previous chunk's tanh/bias/cast instead of strict whole-tile alternation.
SUB_CHUNK = 512


def _tpu_generation():
    """Best-effort TPU generation (5 / 6 / 7 ...); falls back to 6."""
    try:
        kind = jax.devices()[0].device_kind.lower()
        m = re.search(r"v(\d+)", kind)
        if m:
            return int(m.group(1))
    except Exception:
        pass
    return 6


def dnn_kernel(x_ref,
               w1_ref, b1_ref,
               w2_ref, b2_ref,
               w3_ref, b3_ref,
               w5_ref, b5_ref,
               w6_ref, b6_ref,
               o_ref, *, chunk, tanh_bf16):
    """Whole MLP hot path in-kernel: 4 bf16 MXU matmuls (f32 accumulation) + bias +
    tanh, and the final 81->1 layer as a VPU broadcast-multiply + XLU lane reduce
    (an N=1 MXU matmul would use 1 of 128/256 output columns).  The batch tile is
    processed in static row sub-chunks so MXU and EUP work can overlap."""
    tile_b = x_ref.shape[0]

    def act(acc_f32, bias_ref):
        z = acc_f32 + bias_ref[...]
        if tanh_bf16:                      # v6e/v7x: bf16 EUP tanh (~2x packed rate)
            return jnp.tanh(z.astype(jnp.bfloat16))
        return jnp.tanh(z).astype(jnp.bfloat16)   # v5e: no bf16 EUP path

    off = 0
    while off < tile_b:                    # static (trace-time) chunking
        c = min(chunk, tile_b - off)
        h = x_ref[off:off + c, :]                                          # bf16 (c, 8)
        h = act(jnp.dot(h, w1_ref[...], preferred_element_type=jnp.float32), b1_ref)
        h = act(jnp.dot(h, w2_ref[...], preferred_element_type=jnp.float32), b2_ref)
        h = act(jnp.dot(h, w3_ref[...], preferred_element_type=jnp.float32), b3_ref)
        h = jnp.tanh(jnp.dot(h, w5_ref[...], preferred_element_type=jnp.float32)
                     + b5_ref[...])                                        # f32 (c, 128)
        o_ref[off:off + c, :] = (
            jnp.sum(h * w6_ref[...], axis=-1, keepdims=True) + b6_ref[...]
        ).astype(o_ref.dtype)                                              # (c, 1)
        off += c


def _grid_plan(bp, gen):
    """bp: sublane-aligned batch (multiple of 8).  Returns (tile_b, n_tiles).

    v5e/v6e (1 TensorCore): the grid is a serial loop, so use a single big tile
    whenever it fits the cap.  v7x (2 TensorCores): use an even number of equally
    sized tiles so "parallel" sharding gives both cores identical work."""
    if gen >= 7:
        n = 2 * max(1, pl.cdiv(bp, 2 * TILE_CAP))
    else:
        n = max(1, pl.cdiv(bp, TILE_CAP))
    tile = ((pl.cdiv(bp, n) + 7) // 8) * 8         # balanced, sublane-aligned tile
    return tile, n


def dnn_forward(x, kparams, *, tile_b=None, gen=None):
    """x: (B, 3) float32. kparams: output of pad_params(). Returns (B, 1) float32."""
    B = x.shape[0]
    if gen is None:
        gen = _tpu_generation()
    bp = ((B + 7) // 8) * 8                        # sublane-align the batch

    if tile_b is None:
        tile_b, n_tiles = _grid_plan(bp, gen)
    else:
        tile_b = max(8, ((tile_b + 7) // 8) * 8)
        n_tiles = pl.cdiv(bp, tile_b)
        if gen >= 7 and n_tiles % 2:
            n_tiles += 1                           # keep both v7x cores busy
    bp_pad = tile_b * n_tiles                      # round batch UP to whole tiles

    # Pad batch + feature dims with zeros, cast once to bf16 for the MXU.  Padded
    # feature lanes stay exactly 0; padded batch rows are throwaway (sliced off).
    xp = jnp.zeros((bp_pad, P_IN), jnp.bfloat16).at[:B, :D_IN].set(
        x.astype(jnp.bfloat16))

    (w1, b1, w2, b2, w3, b3, w5, b5, w6r, b6) = kparams

    def const_spec(shape):
        # full weight/bias resident in VMEM, same block every grid step (no re-DMA)
        return pl.BlockSpec(shape, lambda i: (0, 0))

    kernel = functools.partial(dnn_kernel,
                               chunk=min(SUB_CHUNK, tile_b),
                               tanh_bf16=(gen >= 6))

    # Explicit scoped-VMEM budget: v5e's default is only 16 MiB; v7x has just
    # 64 MiB physical so leave headroom there.
    vmem_limit = (48 << 20) if gen >= 7 else (64 << 20)

    out = pl.pallas_call(
        kernel,
        out_shape=jax.ShapeDtypeStruct((bp_pad, D_OUT), jnp.float32),
        grid_spec=pltpu.PrefetchScalarGridSpec(
            num_scalar_prefetch=0,
            grid=(n_tiles,),
            in_specs=[
                pl.BlockSpec((tile_b, P_IN), lambda i: (i, 0)),
                const_spec((P_IN, P1)), const_spec((1, P1)),
                const_spec((P1, P2)),   const_spec((1, P2)),
                const_spec((P2, P3)),   const_spec((1, P3)),
                const_spec((P3, P5)),   const_spec((1, P5)),
                const_spec((1, P5)),    const_spec((1, D_OUT)),
            ],
            out_specs=pl.BlockSpec((tile_b, D_OUT), lambda i: (i, 0)),
        ),
        compiler_params=pltpu.CompilerParams(
            dimension_semantics=("parallel",),
            vmem_limit_bytes=vmem_limit),
    )(xp, w1, b1, w2, b2, w3, b3, w5, b5, w6r, b6)
    return out[:B]


def init_params(key):
    """PyTorch-equivalent f32 params: xavier_uniform_ weights, default
    uniform(+-1/sqrt(fan_in)) biases. Weights stored (in_features, out_features)."""
    dims = [(D_IN, D1), (D1, D2), (D2, D3), (D3, D5), (D5, D_OUT)]
    params = []
    for fan_in, fan_out in dims:
        key, kw, kb = jax.random.split(key, 3)
        limit = float(jnp.sqrt(6.0 / (fan_in + fan_out)))
        w = jax.random.uniform(kw, (fan_in, fan_out), jnp.float32, -limit, limit)
        bb = 1.0 / float(jnp.sqrt(fan_in))
        b = jax.random.uniform(kb, (1, fan_out), jnp.float32, -bb, bb)
        params.append((w, b))
    return params


def pad_params(params):
    """Pre-pad once at init to lane/sublane-aligned shapes; weights -> bf16
    (MXU-native), biases stay f32 (added to the f32 accumulator). The last layer
    is kept as an f32 (1, 128) row for the in-kernel VPU reduction."""
    (w1, b1), (w2, b2), (w3, b3), (w5, b5), (w6, b6) = params

    def pad(a, rows, cols, dtype):
        z = jnp.zeros((rows, cols), dtype)
        return z.at[:a.shape[0], :a.shape[1]].set(a.astype(dtype))

    return (
        pad(w1, P_IN, P1, jnp.bfloat16), pad(b1, 1, P1, jnp.float32),
        pad(w2, P1, P2, jnp.bfloat16),   pad(b2, 1, P2, jnp.float32),
        pad(w3, P2, P3, jnp.bfloat16),   pad(b3, 1, P3, jnp.float32),
        pad(w5, P3, P5, jnp.bfloat16),   pad(b5, 1, P5, jnp.float32),
        pad(w6.T, 1, P5, jnp.float32),   b6.astype(jnp.float32),
    )


def dnn_reference(x, params):
    """Pure f32 reference (PyTorch-equivalent semantics)."""
    h = x
    for i, (w, b) in enumerate(params):
        h = h @ w + b
        if i < len(params) - 1:
            h = jnp.tanh(h)
    return h


def dnn_reference_mixed(x, params, *, tanh_bf16):
    """Mirrors the kernel's numerics (bf16 MXU inputs, f32 accumulation,
    and bf16 tanh when the kernel uses the bf16 EUP path)."""
    (w1, b1), (w2, b2), (w3, b3), (w5, b5), (w6, b6) = params
    bf = lambda a: a.astype(jnp.bfloat16)

    def act(z):
        if tanh_bf16:
            return jnp.tanh(bf(z))
        return bf(jnp.tanh(z))

    h = bf(x)
    h = act(jnp.dot(h, bf(w1), preferred_element_type=jnp.float32) + b1)
    h = act(jnp.dot(h, bf(w2), preferred_element_type=jnp.float32) + b2)
    h = act(jnp.dot(h, bf(w3), preferred_element_type=jnp.float32) + b3)
    h = jnp.tanh(jnp.dot(h, bf(w5), preferred_element_type=jnp.float32) + b5)
    return jnp.sum(h * w6[:, 0][None, :].astype(jnp.float32), axis=-1,
                   keepdims=True) + b6


if __name__ == "__main__":
    key = jax.random.PRNGKey(0)
    kx, kp = jax.random.split(key)
    B = 8
    x = jax.random.normal(kx, (B, D_IN), jnp.float32)

    params = init_params(kp)          # PyTorch-equivalent f32 params
    kparams = pad_params(params)      # padded / bf16 kernel operands (built once)

    gen = _tpu_generation()
    out = dnn_forward(x, kparams, gen=gen)
    out = jax.block_until_ready(out)

    ref_mixed = dnn_reference_mixed(x, params, tanh_bf16=(gen >= 6))
    ref_f32 = dnn_reference(x, params)

    assert out.shape == (B, D_OUT), out.shape
    # Same mixed-precision recipe as the kernel (small slack for EUP-vs-XLA bf16
    # tanh rounding differences).
    assert jnp.allclose(out, ref_mixed, atol=2e-2, rtol=2e-2), (out, ref_mixed)
    # bf16 quantization headroom vs the pure-f32 PyTorch-equivalent math.
    assert float(jnp.max(jnp.abs(out - ref_f32))) < 2e-1, (out, ref_f32)
    print("KERNEL_OK")
</pallas_src>

<mosaic_0001>
module attributes {stable_mosaic.version = 11 : i64} {
  func.func @dnn_kernel(%arg0: i32, %arg1: memref<8x8xbf16, #tpu.memory_space<vmem>>, %arg2: memref<8x128xbf16, #tpu.memory_space<vmem>>, %arg3: memref<1x128xf32, #tpu.memory_space<vmem>>, %arg4: memref<128x256xbf16, #tpu.memory_space<vmem>>, %arg5: memref<1x256xf32, #tpu.memory_space<vmem>>, %arg6: memref<256x128xbf16, #tpu.memory_space<vmem>>, %arg7: memref<1x128xf32, #tpu.memory_space<vmem>>, %arg8: memref<128x128xbf16, #tpu.memory_space<vmem>>, %arg9: memref<1x128xf32, #tpu.memory_space<vmem>>, %arg10: memref<1x128xf32, #tpu.memory_space<vmem>>, %arg11: memref<1x1xf32, #tpu.memory_space<vmem>>, %arg12: memref<8x1xf32, #tpu.memory_space<vmem>>) attributes {dimension_semantics = [#tpu.dimension_semantics<parallel>], iteration_bounds = array<i64: 1>, scalar_prefetch = 0 : i64, scratch_operands = 0 : i64, tpu.core_type = #tpu.core_type<tc>, window_params = [{transform_indices = @transform_0, window_bounds = array<i64: 8, 8>}, {pipeline_mode = #tpu.pipeline_mode<synchronous>, transform_indices = @transform_1, window_bounds = array<i64: 8, 128>}, {pipeline_mode = #tpu.pipeline_mode<synchronous>, transform_indices = @transform_2, window_bounds = array<i64: 1, 128>}, {pipeline_mode = #tpu.pipeline_mode<synchronous>, transform_indices = @transform_3, window_bounds = array<i64: 128, 256>}, {pipeline_mode = #tpu.pipeline_mode<synchronous>, transform_indices = @transform_4, window_bounds = array<i64: 1, 256>}, {pipeline_mode = #tpu.pipeline_mode<synchronous>, transform_indices = @transform_5, window_bounds = array<i64: 256, 128>}, {pipeline_mode = #tpu.pipeline_mode<synchronous>, transform_indices = @transform_6, window_bounds = array<i64: 1, 128>}, {pipeline_mode = #tpu.pipeline_mode<synchronous>, transform_indices = @transform_7, window_bounds = array<i64: 128, 128>}, {pipeline_mode = #tpu.pipeline_mode<synchronous>, transform_indices = @transform_8, window_bounds = array<i64: 1, 128>}, {pipeline_mode = #tpu.pipeline_mode<synchronous>, transform_indices = @transform_9, window_bounds = array<i64: 1, 128>}, {pipeline_mode = #tpu.pipeline_mode<synchronous>, transform_indices = @transform_10, window_bounds = array<i64: 1, 1>}, {transform_indices = @transform_11, window_bounds = array<i64: 8, 1>}]} {
    %c0 = arith.constant 0 : index
    %c0_0 = arith.constant 0 : index
    %0 = vector.load %arg1[%c0, %c0_0] : memref<8x8xbf16, #tpu.memory_space<vmem>>, vector<8x8xbf16>
    %c0_1 = arith.constant 0 : index
    %c0_2 = arith.constant 0 : index
    %1 = vector.load %arg2[%c0_1, %c0_2] : memref<8x128xbf16, #tpu.memory_space<vmem>>, vector<8x128xbf16>
    %cst = arith.constant dense<0.000000e+00> : vector<8x128xf32>
    %2 = tpu.matmul %0, %1, %cst {dimension_numbers = #tpu.dot_dimension_numbers<[1], [0], [0], [1], [0, 0, 1, 1], [], []>} : vector<8x8xbf16>, vector<8x128xbf16>, vector<8x128xf32> -> vector<8x128xf32>
    %c0_3 = arith.constant 0 : index
    %c0_4 = arith.constant 0 : index
    %3 = vector.load %arg3[%c0_3, %c0_4] : memref<1x128xf32, #tpu.memory_space<vmem>>, vector<1x128xf32>
    %4 = vector.broadcast %3 : vector<1x128xf32> to vector<8x128xf32>
    %5 = arith.addf %2, %4 : vector<8x128xf32>
    %6 = arith.truncf %5 : vector<8x128xf32> to vector<8x128xbf16>
    %7 = math.tanh %6 : vector<8x128xbf16>
    %c0_5 = arith.constant 0 : index
    %c0_6 = arith.constant 0 : index
    %8 = vector.load %arg4[%c0_5, %c0_6] : memref<128x256xbf16, #tpu.memory_space<vmem>>, vector<128x256xbf16>
    %cst_7 = arith.constant dense<0.000000e+00> : vector<8x256xf32>
    %9 = tpu.matmul %7, %8, %cst_7 {dimension_numbers = #tpu.dot_dimension_numbers<[1], [0], [0], [1], [0, 0, 1, 1], [], []>} : vector<8x128xbf16>, vector<128x256xbf16>, vector<8x256xf32> -> vector<8x256xf32>
    %c0_8 = arith.constant 0 : index
    %c0_9 = arith.constant 0 : index
    %10 = vector.load %arg5[%c0_8, %c0_9] : memref<1x256xf32, #tpu.memory_space<vmem>>, vector<1x256xf32>
    %11 = vector.broadcast %10 : vector<1x256xf32> to vector<8x256xf32>
    %12 = arith.addf %9, %11 : vector<8x256xf32>
    %13 = arith.truncf %12 : vector<8x256xf32> to vector<8x256xbf16>
    %14 = math.tanh %13 : vector<8x256xbf16>
    %c0_10 = arith.constant 0 : index
    %c0_11 = arith.constant 0 : index
    %15 = vector.load %arg6[%c0_10, %c0_11] : memref<256x128xbf16, #tpu.memory_space<vmem>>, vector<256x128xbf16>
    %cst_12 = arith.constant dense<0.000000e+00> : vector<8x128xf32>
    %16 = tpu.matmul %14, %15, %cst_12 {dimension_numbers = #tpu.dot_dimension_numbers<[1], [0], [0], [1], [0, 0, 1, 1], [], []>} : vector<8x256xbf16>, vector<256x128xbf16>, vector<8x128xf32> -> vector<8x128xf32>
    %c0_13 = arith.constant 0 : index
    %c0_14 = arith.constant 0 : index
    %17 = vector.load %arg7[%c0_13, %c0_14] : memref<1x128xf32, #tpu.memory_space<vmem>>, vector<1x128xf32>
    %18 = vector.broadcast %17 : vector<1x128xf32> to vector<8x128xf32>
    %19 = arith.addf %16, %18 : vector<8x128xf32>
    %20 = arith.truncf %19 : vector<8x128xf32> to vector<8x128xbf16>
    %21 = math.tanh %20 : vector<8x128xbf16>
    %c0_15 = arith.constant 0 : index
    %c0_16 = arith.constant 0 : index
    %22 = vector.load %arg8[%c0_15, %c0_16] : memref<128x128xbf16, #tpu.memory_space<vmem>>, vector<128x128xbf16>
    %cst_17 = arith.constant dense<0.000000e+00> : vector<8x128xf32>
    %23 = tpu.matmul %21, %22, %cst_17 {dimension_numbers = #tpu.dot_dimension_numbers<[1], [0], [0], [1], [0, 0, 1, 1], [], []>} : vector<8x128xbf16>, vector<128x128xbf16>, vector<8x128xf32> -> vector<8x128xf32>
    %c0_18 = arith.constant 0 : index
    %c0_19 = arith.constant 0 : index
    %24 = vector.load %arg9[%c0_18, %c0_19] : memref<1x128xf32, #tpu.memory_space<vmem>>, vector<1x128xf32>
    %25 = vector.broadcast %24 : vector<1x128xf32> to vector<8x128xf32>
    %26 = arith.addf %23, %25 : vector<8x128xf32>
    %27 = math.tanh %26 : vector<8x128xf32>
    %c0_20 = arith.constant 0 : index
    %c0_21 = arith.constant 0 : index
    %28 = vector.load %arg10[%c0_20, %c0_21] : memref<1x128xf32, #tpu.memory_space<vmem>>, vector<1x128xf32>
    %29 = vector.broadcast %28 : vector<1x128xf32> to vector<8x128xf32>
    %30 = arith.mulf %27, %29 : vector<8x128xf32>
    %cst_22 = arith.constant dense<0.000000e+00> : vector<8xf32>
    %31 = vector.multi_reduction <add>, %30, %cst_22 [1] : vector<8x128xf32> to vector<8xf32>
    %32 = vector.shape_cast %31 : vector<8xf32> to vector<8x1xf32>
    %c0_23 = arith.constant 0 : index
    %c0_24 = arith.constant 0 : index
    %33 = vector.load %arg11[%c0_23, %c0_24] : memref<1x1xf32, #tpu.memory_space<vmem>>, vector<1x1xf32>
    %34 = vector.broadcast %33 : vector<1x1xf32> to vector<8x1xf32>
    %35 = arith.addf %32, %34 : vector<8x1xf32>
    %c0_25 = arith.constant 0 : index
    %c0_26 = arith.constant 0 : index
    %36 = vector.load %arg12[%c0_25, %c0_26] : memref<8x1xf32, #tpu.memory_space<vmem>>, vector<8x1xf32>
    tpu.vector_store %arg12[%c0_25, %c0_26], %35 {strides = array<i32>} : memref<8x1xf32, #tpu.memory_space<vmem>>, vector<8x1xf32>,
    return
  }
  func.func @transform_0(%arg0: i32) -> (i32, i32) {
    %c0_i32 = arith.constant 0 : i32
    %c0_i32_0 = arith.constant 0 : i32
    return %arg0, %c0_i32 : i32, i32
  }
  func.func @transform_1(%arg0: i32) -> (i32, i32) {
    %c0_i32 = arith.constant 0 : i32
    %c0_i32_0 = arith.constant 0 : i32
    %c0_i32_1 = arith.constant 0 : i32
    return %c0_i32, %c0_i32_0 : i32, i32
  }
  func.func @transform_2(%arg0: i32) -> (i32, i32) {
    %c0_i32 = arith.constant 0 : i32
    %c0_i32_0 = arith.constant 0 : i32
    %c0_i32_1 = arith.constant 0 : i32
    return %c0_i32, %c0_i32_0 : i32, i32
  }
  func.func @transform_3(%arg0: i32) -> (i32, i32) {
    %c0_i32 = arith.constant 0 : i32
    %c0_i32_0 = arith.constant 0 : i32
    %c0_i32_1 = arith.constant 0 : i32
    return %c0_i32, %c0_i32_0 : i32, i32
  }
  func.func @transform_4(%arg0: i32) -> (i32, i32) {
    %c0_i32 = arith.constant 0 : i32
    %c0_i32_0 = arith.constant 0 : i32
    %c0_i32_1 = arith.constant 0 : i32
    return %c0_i32, %c0_i32_0 : i32, i32
  }
  func.func @transform_5(%arg0: i32) -> (i32, i32) {
    %c0_i32 = arith.constant 0 : i32
    %c0_i32_0 = arith.constant 0 : i32
    %c0_i32_1 = arith.constant 0 : i32
    return %c0_i32, %c0_i32_0 : i32, i32
  }
  func.func @transform_6(%arg0: i32) -> (i32, i32) {
    %c0_i32 = arith.constant 0 : i32
    %c0_i32_0 = arith.constant 0 : i32
    %c0_i32_1 = arith.constant 0 : i32
    return %c0_i32, %c0_i32_0 : i32, i32
  }
  func.func @transform_7(%arg0: i32) -> (i32, i32) {
    %c0_i32 = arith.constant 0 : i32
    %c0_i32_0 = arith.constant 0 : i32
    %c0_i32_1 = arith.constant 0 : i32
    return %c0_i32, %c0_i32_0 : i32, i32
  }
  func.func @transform_8(%arg0: i32) -> (i32, i32) {
    %c0_i32 = arith.constant 0 : i32
    %c0_i32_0 = arith.constant 0 : i32
    %c0_i32_1 = arith.constant 0 : i32
    return %c0_i32, %c0_i32_0 : i32, i32
  }
  func.func @transform_9(%arg0: i32) -> (i32, i32) {
    %c0_i32 = arith.constant 0 : i32
    %c0_i32_0 = arith.constant 0 : i32
    %c0_i32_1 = arith.constant 0 : i32
    return %c0_i32, %c0_i32_0 : i32, i32
  }
  func.func @transform_10(%arg0: i32) -> (i32, i32) {
    %c0_i32 = arith.constant 0 : i32
    %c0_i32_0 = arith.constant 0 : i32
    %c0_i32_1 = arith.constant 0 : i32
    return %c0_i32, %c0_i32_0 : i32, i32
  }
  func.func @transform_11(%arg0: i32) -> (i32, i32) {
    %c0_i32 = arith.constant 0 : i32
    %c0_i32_0 = arith.constant 0 : i32
    return %arg0, %c0_i32 : i32, i32
  }
}

</mosaic_0001>

<llo_original>
// kernel: tpu_custom_call.1
$region0: #{tpu_custom_call.1}
  #allocation0 [shape = 'u32[]', space=smem, size = 0x4, offset = 0x4, fixed_abs, tag = 'smem constant byte address 0x4 - core index']
  #allocation1 [shape = 'u32[72,128]{1,0:T(1,128)}', space=vmem, size = 0x9000, scoped, tag = 'internal scratch']
  #allocation2 [shape = 'f32[1,1]{1,0:T(1,128)S(1)}', space=vmem, size = 0x200, scoped, tag = 'scoped memory for tpu_custom_call.1']
  %s0 = inlined_call_operand.hbm [shape: bf16[8,8], index: 0, kind: input, shape index: {}]
  %s1 = inlined_call_operand.hbm [shape: bf16[8,128], index: 1, kind: input, shape index: {}]
  %s2 = inlined_call_operand.vmem [shape: f32[1,128], index: 2, kind: input, shape index: {}]
  %s3 = inlined_call_operand.hbm [shape: bf16[128,256], index: 3, kind: input, shape index: {}]
  %s4 = inlined_call_operand.vmem [shape: f32[1,256], index: 4, kind: input, shape index: {}]
  %s5 = inlined_call_operand.hbm [shape: bf16[256,128], index: 5, kind: input, shape index: {}]
  %s6 = inlined_call_operand.vmem [shape: f32[1,128], index: 6, kind: input, shape index: {}]
  %s7 = inlined_call_operand.hbm [shape: bf16[128,128], index: 7, kind: input, shape index: {}]
  %s8 = inlined_call_operand.vmem [shape: f32[1,128], index: 8, kind: input, shape index: {}]
  %s9 = inlined_call_operand.vmem [shape: f32[1,128], index: 9, kind: input, shape index: {}]
  %s10 = inlined_call_operand.<no memory space> [shape: f32[1,1], index: 10, kind: input, shape index: {}]
  %s11 = inlined_call_operand.vmem [shape: f32[8,1], index: 11, kind: output, shape index: {}]
  %s12 = sld [smem:[#allocation0]]
  $region74: #{tpu_custom_call.1} parent=0
    _
  %s14 = ssub.s32 1, %s12
  %s15 = scalar_select 0, %s14, %s12
  %v16 = vstv %s10
  %17 = vst [vmem:[#allocation2] sm:$0x1] %v16
  $region1: #{tpu_custom_call.1} parent=0
    #allocation3 [shape = 'u8[2048]{0}', space=vmem, size = 0x800, scoped, tag = 'input window, operand 0, single buffered']
    #allocation4 [shape = 's32[1]{0}', space=sflag, size = 0x4, scoped, tag = 'scoped memory for tpu_custom_call.1']
    #allocation5 [shape = 'u8[2048]{0}', space=vmem, size = 0x800, scoped, tag = 'input window, operand 1, single buffered']
    #allocation6 [shape = 's32[1]{0}', space=sflag, size = 0x4, scoped, tag = 'scoped memory for tpu_custom_call.1']
    #allocation7 [shape = 'u8[65536]{0}', space=vmem, size = 0x10000, scoped, tag = 'input window, operand 3, single buffered']
    #allocation8 [shape = 'u8[65536]{0}', space=vmem, size = 0x10000, scoped, tag = 'input window, operand 5, single buffered']
    #allocation9 [shape = 's32[1]{0}', space=sflag, size = 0x4, scoped, tag = 'scoped memory for tpu_custom_call.1']
    #allocation10 [shape = 'u8[32768]{0}', space=vmem, size = 0x8000, scoped, tag = 'input window, operand 7, single buffered']
    %18 = vsyncpa [#allocation4], 0
    %19 = vsyncpa [#allocation6], 0
    %20 = vsyncpa [#allocation9], 0
    // Predicated region
    $region2: #{tpu_custom_call.1} parent=1 // pred_check
      _
    $region3: #{tpu_custom_call.1} parent=1 // pred_check_branch
      %22 = sbr.rel (0) target = $region5
    $region4: #{tpu_custom_call.1} parent=1 // pred_region
      %24 = vsyncadd [#allocation4], 0
      %s26 = sshll.u32 %s0, 4
      %s27 = int_to_ptr.hbm [resolvable:$true] %s26
      %s28 = sshll.u32 [#allocation3], 4
      %s29 = int_to_ptr.vmem [resolvable:$true] %s28
      %31 = dma.hbm_to_vmem [thread:$0]  %s27, 64, %s29, [#allocation4]
    $region5: #{tpu_custom_call.1} parent=1 // pred_fallthru
      _
    // Predicated region
    $region6: #{tpu_custom_call.1} parent=1 // pred_check
      _
    $region7: #{tpu_custom_call.1} parent=1 // pred_check_branch
      %33 = sbr.rel (0) target = $region9
    $region8: #{tpu_custom_call.1} parent=1 // pred_region
      %35 = vsyncadd [#allocation6], 0
      %s37 = sshll.u32 %s1, 4
      %s38 = int_to_ptr.hbm [resolvable:$true] %s37
      %s39 = sshll.u32 [#allocation5], 4
      %s40 = int_to_ptr.vmem [resolvable:$true] %s39
      %42 = dma.hbm_to_vmem [thread:$0]  %s38, 64, %s40, [#allocation6]
    $region9: #{tpu_custom_call.1} parent=1 // pred_fallthru
      _
    // Predicated region
    $region10: #{tpu_custom_call.1} parent=1 // pred_check
      _
    $region11: #{tpu_custom_call.1} parent=1 // pred_check_branch
      %44 = sbr.rel (0) target = $region13
    $region12: #{tpu_custom_call.1} parent=1 // pred_region
      _
    $region13: #{tpu_custom_call.1} parent=1 // pred_fallthru
      _
    // Predicated region
    $region14: #{tpu_custom_call.1} parent=1 // pred_check
      _
    $region15: #{tpu_custom_call.1} parent=1 // pred_check_branch
      %46 = sbr.rel (0) target = $region17
    $region16: #{tpu_custom_call.1} parent=1 // pred_region
      %48 = vsyncadd [#allocation6], 0
      %s49 = sshll.u32 %s3, 4
      %s50 = int_to_ptr.hbm [resolvable:$true] %s49
      %s51 = sshll.u32 [#allocation7], 4
      %s52 = int_to_ptr.vmem [resolvable:$true] %s51
      %57 = dma.hbm_to_vmem [thread:$0]  %s50, 2048, %s52, [#allocation6], 128, 128, 8
    $region17: #{tpu_custom_call.1} parent=1 // pred_fallthru
      _
    // Predicated region
    $region18: #{tpu_custom_call.1} parent=1 // pred_check
      _
    $region19: #{tpu_custom_call.1} parent=1 // pred_check_branch
      %59 = sbr.rel (0) target = $region21
    $region20: #{tpu_custom_call.1} parent=1 // pred_region
      _
    $region21: #{tpu_custom_call.1} parent=1 // pred_fallthru
      _
    // Predicated region
    $region22: #{tpu_custom_call.1} parent=1 // pred_check
      _
    $region23: #{tpu_custom_call.1} parent=1 // pred_check_branch
      %61 = sbr.rel (0) target = $region25
    $region24: #{tpu_custom_call.1} parent=1 // pred_region
      %63 = vsyncadd [#allocation9], 0
      %s64 = sshll.u32 %s5, 4
      %s65 = int_to_ptr.hbm [resolvable:$true] %s64
      %s66 = sshll.u32 [#allocation8], 4
      %s67 = int_to_ptr.vmem [resolvable:$true] %s66
      %72 = dma.hbm_to_vmem [thread:$0]  %s65, 2048, %s67, [#allocation9], 64, 64, 4
    $region25: #{tpu_custom_call.1} parent=1 // pred_fallthru
      _
    // Predicated region
    $region26: #{tpu_custom_call.1} parent=1 // pred_check
      _
    $region27: #{tpu_custom_call.1} parent=1 // pred_check_branch
      %74 = sbr.rel (0) target = $region29
    $region28: #{tpu_custom_call.1} parent=1 // pred_region
      _
    $region29: #{tpu_custom_call.1} parent=1 // pred_fallthru
      _
    // Predicated region
    $region30: #{tpu_custom_call.1} parent=1 // pred_check
      _
    $region31: #{tpu_custom_call.1} parent=1 // pred_check_branch
      %76 = sbr.rel (0) target = $region33
    $region32: #{tpu_custom_call.1} parent=1 // pred_region
      %78 = vsyncadd [#allocation9], 0
      %s79 = sshll.u32 %s7, 4
      %s80 = int_to_ptr.hbm [resolvable:$true] %s79
      %s81 = sshll.u32 [#allocation10], 4
      %s82 = int_to_ptr.vmem [resolvable:$true] %s81
      %87 = dma.hbm_to_vmem [thread:$0]  %s80, 1024, %s82, [#allocation9], 64, 64, 4
    $region33: #{tpu_custom_call.1} parent=1 // pred_fallthru
      _
    // Predicated region
    $region34: #{tpu_custom_call.1} parent=1 // pred_check
      _
    $region35: #{tpu_custom_call.1} parent=1 // pred_check_branch
      %89 = sbr.rel (0) target = $region37
    $region36: #{tpu_custom_call.1} parent=1 // pred_region
      _
    $region37: #{tpu_custom_call.1} parent=1 // pred_fallthru
      _
    // Predicated region
    $region38: #{tpu_custom_call.1} parent=1 // pred_check
      _
    $region39: #{tpu_custom_call.1} parent=1 // pred_check_branch
      %91 = sbr.rel (0) target = $region41
    $region40: #{tpu_custom_call.1} parent=1 // pred_region
      _
    $region41: #{tpu_custom_call.1} parent=1 // pred_fallthru
      _
    // Predicated region
    $region42: #{tpu_custom_call.1} parent=1 // pred_check
      _
    $region43: #{tpu_custom_call.1} parent=1 // pred_check_branch
      %93 = sbr.rel (0) target = $region45
    $region44: #{tpu_custom_call.1} parent=1 // pred_region
      _
    $region45: #{tpu_custom_call.1} parent=1 // pred_fallthru
      _
    // Predicated region
    $region46: #{tpu_custom_call.1} parent=1 // pred_check
      _
    $region47: #{tpu_custom_call.1} parent=1 // pred_check_branch
      %95 = sbr.rel (0) target = $region49
    $region48: #{tpu_custom_call.1} parent=1 // pred_region
      %97 = dma.done [#allocation4], 64
    $region49: #{tpu_custom_call.1} parent=1 // pred_fallthru
      _
    // Predicated region
    $region50: #{tpu_custom_call.1} parent=1 // pred_check
      _
    $region51: #{tpu_custom_call.1} parent=1 // pred_check_branch
      %99 = sbr.rel (0) target = $region53
    $region52: #{tpu_custom_call.1} parent=1 // pred_region
      %101 = dma.done [#allocation6], 64
    $region53: #{tpu_custom_call.1} parent=1 // pred_fallthru
      _
    // Predicated region
    $region54: #{tpu_custom_call.1} parent=1 // pred_check
      _
    $region55: #{tpu_custom_call.1} parent=1 // pred_check_branch
      %103 = sbr.rel (0) target = $region57
    $region56: #{tpu_custom_call.1} parent=1 // pred_region
      %105 = dma.done [#allocation6], 2048
    $region57: #{tpu_custom_call.1} parent=1 // pred_fallthru
      _
    // Predicated region
    $region58: #{tpu_custom_call.1} parent=1 // pred_check
      _
    $region59: #{tpu_custom_call.1} parent=1 // pred_check_branch
      %107 = sbr.rel (0) target = $region61
    $region60: #{tpu_custom_call.1} parent=1 // pred_region
      %109 = dma.done [#allocation9], 2048
    $region61: #{tpu_custom_call.1} parent=1 // pred_fallthru
      _
    // Predicated region
    $region62: #{tpu_custom_call.1} parent=1 // pred_check
      _
    $region63: #{tpu_custom_call.1} parent=1 // pred_check_branch
      %111 = sbr.rel (0) target = $region65
    $region64: #{tpu_custom_call.1} parent=1 // pred_region
      %113 = dma.done [#allocation9], 1024
    $region65: #{tpu_custom_call.1} parent=1 // pred_fallthru
      _
    %v115 = vld [vmem:[#allocation3] sm:$0xf]
    %v116 = vld [vmem:[#allocation5] sm:$0xf]
    %v117 = vld [vmem:[%s2] sm:$0x1]
    %v119 = vperm.slane %v117, 0
    %vm121 = vcmask 64512
    %v123 = vsel %vm121, %v115, 0
    %vm125 = vcmask 1043456
    %v127 = vsel %vm125, %v116, 0
    %129 = vmatpush.bf16.msra.mxu0 0
    %130 = vmatpush.bf16.msra.mxu0 0
    %131 = vmatpush.bf16.msra.mxu0 0
    %132 = vmatpush.bf16.msra.mxu0 0
    %133 = vmatpush.bf16.msra.mxu0 0
    %134 = vmatpush.bf16.msra.mxu0 0
    %135 = vmatpush.bf16.msra.mxu0 0
    %136 = vmatpush.bf16.msra.mxu0 %v127
    %137 = vmatmul.bf16.gmra.mxu0 %v123
    %v138 = vpop.f32.mrf.mxu0
    %v139 = vadd.f32 %v119, %v138
    %v140 = vpop.f32.mrf.mxu0
    %141 = vdwg.mxu0
    %v142 = vpack.c.bf16 %v139, %v139
    %v143 = vunpack.c.l.bf16 %v142
    %v144 = vtanh.pop %v143
    %v145 = vpack.c.bf16 %v144, %v144
    %v146 = vld [vmem:[#allocation7] sm:$0xff]
    %v147 = vld [vmem:[#allocation7 + $0x8] sm:$0xff]
    %v148 = vld [vmem:[#allocation7 + $0x10] sm:$0xff]
    %v149 = vld [vmem:[#allocation7 + $0x18] sm:$0xff]
    %v150 = vld [vmem:[#allocation7 + $0x20] sm:$0xff]
    %v151 = vld [vmem:[#allocation7 + $0x28] sm:$0xff]
    %v152 = vld [vmem:[#allocation7 + $0x30] sm:$0xff]
    %v153 = vld [vmem:[#allocation7 + $0x38] sm:$0xff]
    %v154 = vld [vmem:[#allocation7 + $0x40] sm:$0xff]
    %v155 = vld [vmem:[#allocation7 + $0x48] sm:$0xff]
    %v156 = vld [vmem:[#allocation7 + $0x50] sm:$0xff]
    %v157 = vld [vmem:[#allocation7 + $0x58] sm:$0xff]
    %v158 = vld [vmem:[#allocation7 + $0x60] sm:$0xff]
    %v159 = vld [vmem:[#allocation7 + $0x68] sm:$0xff]
    %v160 = vld [vmem:[#allocation7 + $0x70] sm:$0xff]
    %v161 = vld [vmem:[#allocation7 + $0x78] sm:$0xff]
    %v162 = vld [vmem:[%s4] sm:$0x3]
    %v164 = vperm.slane %v162, 0
    %v165 = vperm.slane %v162, 1
    %v184 = vunpack.c.l.b16 %v146
    %v185 = vunpack.c.h.b16 %v146
    %v186 = vunpack.c.l.b16 %v147
    %v187 = vunpack.c.h.b16 %v147
    %v188 = vunpack.c.l.b16 %v148
    %v189 = vunpack.c.h.b16 %v148
    %v190 = vunpack.c.l.b16 %v149
    %v191 = vunpack.c.h.b16 %v149
    %v192 = vunpack.c.l.b16 %v150
    %v193 = vunpack.c.h.b16 %v150
    %v194 = vunpack.c.l.b16 %v151
    %v195 = vunpack.c.h.b16 %v151
    %v196 = vunpack.c.l.b16 %v152
    %v197 = vunpack.c.h.b16 %v152
    %v198 = vunpack.c.l.b16 %v153
    %v199 = vunpack.c.h.b16 %v153
    %v200 = vunpack.c.l.b16 %v154
    %v201 = vunpack.c.h.b16 %v154
    %v202 = vunpack.c.l.b16 %v155
    %v203 = vunpack.c.h.b16 %v155
    %v204 = vunpack.c.l.b16 %v156
    %v205 = vunpack.c.h.b16 %v156
    %v206 = vunpack.c.l.b16 %v157
    %v207 = vunpack.c.h.b16 %v157
    %v208 = vunpack.c.l.b16 %v158
    %v209 = vunpack.c.h.b16 %v158
    %v210 = vunpack.c.l.b16 %v159
    %v211 = vunpack.c.h.b16 %v159
    %v212 = vunpack.c.l.b16 %v160
    %v213 = vunpack.c.h.b16 %v160
    %v214 = vunpack.c.l.b16 %v161
    %v215 = vunpack.c.h.b16 %v161
    %v216 = vpack.c.b16 %v186, %v184
    %v217 = vpack.c.b16 %v187, %v185
    %v218 = vpack.c.b16 %v190, %v188
    %v219 = vpack.c.b16 %v191, %v189
    %v220 = vpack.c.b16 %v194, %v192
    %v221 = vpack.c.b16 %v195, %v193
    %v222 = vpack.c.b16 %v198, %v196
    %v223 = vpack.c.b16 %v199, %v197
    %v224 = vpack.c.b16 %v202, %v200
    %v225 = vpack.c.b16 %v203, %v201
    %v226 = vpack.c.b16 %v206, %v204
    %v227 = vpack.c.b16 %v207, %v205
    %v228 = vpack.c.b16 %v210, %v208
    %v229 = vpack.c.b16 %v211, %v209
    %v230 = vpack.c.b16 %v214, %v212
    %v231 = vpack.c.b16 %v215, %v213
    %248 = vmatpush.bf16.msra.mxu0 %v230
    %249 = vmatpush.bf16.msra.mxu0 %v228
    %250 = vmatpush.bf16.msra.mxu0 %v226
    %251 = vmatpush.bf16.msra.mxu0 %v224
    %252 = vmatpush.bf16.msra.mxu0 %v222
    %253 = vmatpush.bf16.msra.mxu0 %v220
    %254 = vmatpush.bf16.msra.mxu0 %v218
    %255 = vmatpush.bf16.msra.mxu0 %v216
    %256 = vmatmul.bf16.gmra.mxu0 %v145
    %v257 = vpop.f32.mrf.mxu0
    %v258 = vadd.f32 %v164, %v257
    %v259 = vpop.f32.mrf.mxu0
    %260 = vdwg.mxu0
    %261 = vmatpush.bf16.msra.mxu0 %v231
    %262 = vmatpush.bf16.msra.mxu0 %v229
    %263 = vmatpush.bf16.msra.mxu0 %v227
    %264 = vmatpush.bf16.msra.mxu0 %v225
    %265 = vmatpush.bf16.msra.mxu0 %v223
    %266 = vmatpush.bf16.msra.mxu0 %v221
    %267 = vmatpush.bf16.msra.mxu0 %v219
    %268 = vmatpush.bf16.msra.mxu0 %v217
    %269 = vmatmul.bf16.gmra.mxu0 %v145
    %v270 = vpop.f32.mrf.mxu0
    %v271 = vadd.f32 %v165, %v270
    %v272 = vpop.f32.mrf.mxu0
    %273 = vdwg.mxu0
    %v274 = vpack.c.bf16 %v258, %v258
    %v275 = vpack.c.bf16 %v271, %v271
    %v276 = vunpack.c.l.bf16 %v274
    %v277 = vunpack.c.l.bf16 %v275
    %v278 = vtanh.pop %v276
    %v279 = vtanh.pop %v277
    %v280 = vpack.c.bf16 %v278, %v278
    %v281 = vpack.c.bf16 %v279, %v279
    %v282 = vld [vmem:[#allocation8] sm:$0xf]
    %v283 = vld [vmem:[#allocation8 + $0x4] sm:$0xf]
    %v284 = vld [vmem:[#allocation8 + $0x8] sm:$0xf]
    %v285 = vld [vmem:[#allocation8 + $0xc] sm:$0xf]
    %v286 = vld [vmem:[#allocation8 + $0x10] sm:$0xf]
    %v287 = vld [vmem:[#allocation8 + $0x14] sm:$0xf]
    %v288 = vld [vmem:[#allocation8 + $0x18] sm:$0xf]
    %v289 = vld [vmem:[#allocation8 + $0x1c] sm:$0xf]
    %v290 = vld [vmem:[#allocation8 + $0x20] sm:$0xf]
    %v291 = vld [vmem:[#allocation8 + $0x24] sm:$0xf]
    %v292 = vld [vmem:[#allocation8 + $0x28] sm:$0xf]
    %v293 = vld [vmem:[#allocation8 + $0x2c] sm:$0xf]
    %v294 = vld [vmem:[#allocation8 + $0x30] sm:$0xf]
    %v295 = vld [vmem:[#allocation8 + $0x34] sm:$0xf]
    %v296 = vld [vmem:[#allocation8 + $0x38] sm:$0xf]
    %v297 = vld [vmem:[#allocation8 + $0x3c] sm:$0xf]
    %v298 = vld [vmem:[#allocation8 + $0x40] sm:$0xf]
    %v299 = vld [vmem:[#allocation8 + $0x44] sm:$0xf]
    %v300 = vld [vmem:[#allocation8 + $0x48] sm:$0xf]
    %v301 = vld [vmem:[#allocation8 + $0x4c] sm:$0xf]
    %v302 = vld [vmem:[#allocation8 + $0x50] sm:$0xf]
    %v303 = vld [vmem:[#allocation8 + $0x54] sm:$0xf]
    %v304 = vld [vmem:[#allocation8 + $0x58] sm:$0xf]
    %v305 = vld [vmem:[#allocation8 + $0x5c] sm:$0xf]
    %v306 = vld [vmem:[#allocation8 + $0x60] sm:$0xf]
    %v307 = vld [vmem:[#allocation8 + $0x64] sm:$0xf]
    %v308 = vld [vmem:[#allocation8 + $0x68] sm:$0xf]
    %v309 = vld [vmem:[#allocation8 + $0x6c] sm:$0xf]
    %v310 = vld [vmem:[#allocation8 + $0x70] sm:$0xf]
    %v311 = vld [vmem:[#allocation8 + $0x74] sm:$0xf]
    %v312 = vld [vmem:[#allocation8 + $0x78] sm:$0xf]
    %v313 = vld [vmem:[#allocation8 + $0x7c] sm:$0xf]
    %v314 = vld [vmem:[%s6] sm:$0x1]
    %v316 = vperm.slane %v314, 0
    %v350 = vunpack.c.l.b16 %v282
    %v351 = vunpack.c.l.b16 %v283
    %v352 = vunpack.c.l.b16 %v284
    %v353 = vunpack.c.l.b16 %v285
    %v354 = vunpack.c.l.b16 %v286
    %v355 = vunpack.c.l.b16 %v287
    %v356 = vunpack.c.l.b16 %v288
    %v357 = vunpack.c.l.b16 %v289
    %v358 = vunpack.c.l.b16 %v290
    %v359 = vunpack.c.l.b16 %v291
    %v360 = vunpack.c.l.b16 %v292
    %v361 = vunpack.c.l.b16 %v293
    %v362 = vunpack.c.l.b16 %v294
    %v363 = vunpack.c.l.b16 %v295
    %v364 = vunpack.c.l.b16 %v296
    %v365 = vunpack.c.l.b16 %v297
    %v366 = vunpack.c.l.b16 %v298
    %v367 = vunpack.c.l.b16 %v299
    %v368 = vunpack.c.l.b16 %v300
    %v369 = vunpack.c.l.b16 %v301
    %v370 = vunpack.c.l.b16 %v302
    %v371 = vunpack.c.l.b16 %v303
    %v372 = vunpack.c.l.b16 %v304
    %v373 = vunpack.c.l.b16 %v305
    %v374 = vunpack.c.l.b16 %v306
    %v375 = vunpack.c.l.b16 %v307
    %v376 = vunpack.c.l.b16 %v308
    %v377 = vunpack.c.l.b16 %v309
    %v378 = vunpack.c.l.b16 %v310
    %v379 = vunpack.c.l.b16 %v311
    %v380 = vunpack.c.l.b16 %v312
    %v381 = vunpack.c.l.b16 %v313
    %v382 = vpack.c.b16 %v351, %v350
    %v383 = vpack.c.b16 %v353, %v352
    %v384 = vpack.c.b16 %v355, %v354
    %v385 = vpack.c.b16 %v357, %v356
    %v386 = vpack.c.b16 %v359, %v358
    %v387 = vpack.c.b16 %v361, %v360
    %v388 = vpack.c.b16 %v363, %v362
    %v389 = vpack.c.b16 %v365, %v364
    %v390 = vpack.c.b16 %v367, %v366
    %v391 = vpack.c.b16 %v369, %v368
    %v392 = vpack.c.b16 %v371, %v370
    %v393 = vpack.c.b16 %v373, %v372
    %v394 = vpack.c.b16 %v375, %v374
    %v395 = vpack.c.b16 %v377, %v376
    %v396 = vpack.c.b16 %v379, %v378
    %v397 = vpack.c.b16 %v381, %v380
    %414 = vmatpush.bf16.msra.mxu0 %v389
    %415 = vmatpush.bf16.msra.mxu0 %v388
    %416 = vmatpush.bf16.msra.mxu0 %v387
    %417 = vmatpush.bf16.msra.mxu0 %v386
    %418 = vmatpush.bf16.msra.mxu0 %v385
    %419 = vmatpush.bf16.msra.mxu0 %v384
    %420 = vmatpush.bf16.msra.mxu0 %v383
    %421 = vmatpush.bf16.msra.mxu0 %v382
    %422 = vmatmul.bf16.gmra.mxu0 %v280
    %v423 = vpop.f32.mrf.mxu0
    %v424 = vadd.f32 %v316, %v423
    %v425 = vpop.f32.mrf.mxu0
    %426 = vdwg.mxu0
    %427 = vmatpush.bf16.msra.mxu0 %v397
    %428 = vmatpush.bf16.msra.mxu0 %v396
    %429 = vmatpush.bf16.msra.mxu0 %v395
    %430 = vmatpush.bf16.msra.mxu0 %v394
    %431 = vmatpush.bf16.msra.mxu0 %v393
    %432 = vmatpush.bf16.msra.mxu0 %v392
    %433 = vmatpush.bf16.msra.mxu0 %v391
    %434 = vmatpush.bf16.msra.mxu0 %v390
    %435 = vmatmul.bf16.gmra.mxu0 %v281
    %v436 = vpop.f32.mrf.mxu0
    %v437 = vadd.f32 %v424, %v436
    %v438 = vpop.f32.mrf.mxu0
    %439 = vdwg.mxu0
    %v440 = vpack.c.bf16 %v437, %v437
    %v441 = vunpack.c.l.bf16 %v440
    %v442 = vtanh.pop %v441
    %v443 = vpack.c.bf16 %v442, %v442
    %v444 = vld [vmem:[#allocation10] sm:$0xf]
    %v445 = vld [vmem:[#allocation10 + $0x4] sm:$0xf]
    %v446 = vld [vmem:[#allocation10 + $0x8] sm:$0xf]
    %v447 = vld [vmem:[#allocation10 + $0xc] sm:$0xf]
    %v448 = vld [vmem:[#allocation10 + $0x10] sm:$0xf]
    %v449 = vld [vmem:[#allocation10 + $0x14] sm:$0xf]
    %v450 = vld [vmem:[#allocation10 + $0x18] sm:$0xf]
    %v451 = vld [vmem:[#allocation10 + $0x1c] sm:$0xf]
    %v452 = vld [vmem:[#allocation10 + $0x20] sm:$0xf]
    %v453 = vld [vmem:[#allocation10 + $0x24] sm:$0xf]
    %v454 = vld [vmem:[#allocation10 + $0x28] sm:$0xf]
    %v455 = vld [vmem:[#allocation10 + $0x2c] sm:$0xf]
    %v456 = vld [vmem:[#allocation10 + $0x30] sm:$0xf]
    %v457 = vld [vmem:[#allocation10 + $0x34] sm:$0xf]
    %v458 = vld [vmem:[#allocation10 + $0x38] sm:$0xf]
    %v459 = vld [vmem:[#allocation10 + $0x3c] sm:$0xf]
    %v460 = vld [vmem:[%s8] sm:$0x1]
    %v462 = vperm.slane %v460, 0
    %v480 = vunpack.c.l.b16 %v444
    %v481 = vunpack.c.l.b16 %v445
    %v482 = vunpack.c.l.b16 %v446
    %v483 = vunpack.c.l.b16 %v447
    %v484 = vunpack.c.l.b16 %v448
    %v485 = vunpack.c.l.b16 %v449
    %v486 = vunpack.c.l.b16 %v450
    %v487 = vunpack.c.l.b16 %v451
    %v488 = vunpack.c.l.b16 %v452
    %v489 = vunpack.c.l.b16 %v453
    %v490 = vunpack.c.l.b16 %v454
    %v491 = vunpack.c.l.b16 %v455
    %v492 = vunpack.c.l.b16 %v456
    %v493 = vunpack.c.l.b16 %v457
    %v494 = vunpack.c.l.b16 %v458
    %v495 = vunpack.c.l.b16 %v459
    %v496 = vpack.c.b16 %v481, %v480
    %v497 = vpack.c.b16 %v483, %v482
    %v498 = vpack.c.b16 %v485, %v484
    %v499 = vpack.c.b16 %v487, %v486
    %v500 = vpack.c.b16 %v489, %v488
    %v501 = vpack.c.b16 %v491, %v490
    %v502 = vpack.c.b16 %v493, %v492
    %v503 = vpack.c.b16 %v495, %v494
    %512 = vmatpush.bf16.msra.mxu0 %v503
    %513 = vmatpush.bf16.msra.mxu0 %v502
    %514 = vmatpush.bf16.msra.mxu0 %v501
    %515 = vmatpush.bf16.msra.mxu0 %v500
    %516 = vmatpush.bf16.msra.mxu0 %v499
    %517 = vmatpush.bf16.msra.mxu0 %v498
    %518 = vmatpush.bf16.msra.mxu0 %v497
    %519 = vmatpush.bf16.msra.mxu0 %v496
    %520 = vmatmul.bf16.gmra.mxu0 %v443
    %v521 = vpop.f32.mrf.mxu0
    %v522 = vadd.f32 %v462, %v521
    %v523 = vpop.f32.mrf.mxu0
    %524 = vdwg.mxu0
    %v525 = vtanh.pop %v522
    %v526 = vld [vmem:[%s9] sm:$0x1]
    %v528 = vperm.slane %v526, 0
    %v530 = vmul.f32 %v525, %v528
    %531 = vadd.xlane.f32.xlu0 %v530
    %v532 = vpop.xlane.xlu0 %531
    %v533 = vld [vmem:[#allocation2] sm:$0x1]
    %v535 = vperm.slane %v533, 0
    %v537 = vadd.f32 %v532, %v535
    %vm538 = vcmask 7168
    %539 = vst.msk [vmem:[%s11] sm:$0xff] %vm538, %v537
    // Predicated region
    $region66: #{tpu_custom_call.1} parent=1 // pred_check
      _
    $region67: #{tpu_custom_call.1} parent=1 // pred_check_branch
      %541 = sbr.rel (0) target = $region69
    $region68: #{tpu_custom_call.1} parent=1 // pred_region
      _
    $region69: #{tpu_custom_call.1} parent=1 // pred_fallthru
      _
    // Predicated region
    $region70: #{tpu_custom_call.1} parent=1 // pred_check
      _
    $region71: #{tpu_custom_call.1} parent=1 // pred_check_branch
      %543 = sbr.rel (0) target = $region73
    $region72: #{tpu_custom_call.1} parent=1 // pred_region
      _
    $region73: #{tpu_custom_call.1} parent=1 // pred_fallthru
      _
    %544 = vsyncpa [#allocation4], 1
    %545 = vsyncpa [#allocation6], 1
    %546 = vsyncpa [#allocation9], 1

</llo_original>
